<compile_context>
chip_gen: v6e
topology: v6e:2x2x1
jax: 0.10.0
libtpu: 0.0.40
codegen_flags: <defaults>
</compile_context>

<pallas_src>
import jax
import jax.numpy as jnp
from jax.experimental import pallas as pl


_LANES = 128                               # batch padded onto the lane axis
_FEATS = 8                                 # max feature width (all layers padded to 8)
_DIMS = [(8, 8), (8, 4), (4, 2), (2, 2)]   # (in, out) per layer, torch spec
_N_LAYERS = len(_DIMS)
_B_COL = 8 * _N_LAYERS                     # slab column where biases start (one col per layer)


def _sigmoid(x):
    # Numerically-stable sigmoid; tanh is a single EUP op.
    return 0.5 * (jnp.tanh(0.5 * x) + 1.0)


def mlp_kernel(x_ref, p_ref, o_ref):
    x = x_ref[...]                                        # (8, 128) = one f32 vreg
    for l in range(_N_LAYERS):
        w = p_ref[:, 8 * l:8 * (l + 1)]                   # (8, 8)  zero-padded (out, in)
        b = p_ref[:, _B_COL + l:_B_COL + l + 1]           # (8, 1)  zero-padded bias
        h = jnp.broadcast_to(b, (_FEATS, _LANES))         # bias seeds the accumulator
        # Unrolled VPU multiply-accumulate over the padded contraction dim
        # (padded rows/cols are exact zeros, so they contribute nothing).
        for i in range(_FEATS):
            h = h + w[:, i:i + 1] * x[i:i + 1, :]
        x = _sigmoid(h) if l < _N_LAYERS - 1 else h
    o_ref[...] = x                                        # full unmasked (8,128) store


def _pack_params(params):
    """Zero-pad every layer to (8,8)/(8,) and pack into one (8,128) f32 slab."""
    slab = jnp.zeros((_FEATS, _LANES), jnp.float32)
    for l, (fin, fout) in enumerate(_DIMS):
        w = params[f"w{l}"]                               # torch layout (out, in)
        b = params[f"b{l}"]                               # (out,)
        slab = slab.at[:fout, 8 * l:8 * l + fin].set(w)
        slab = slab.at[:fout, _B_COL + l].set(b)
    return slab


def mlp_forward(x, params):
    """x: (B, 8) float32 with B <= 128; params: torch-layout weights/biases."""
    B, F = x.shape
    assert F == 8 and B <= _LANES
    # TODO(synk): tile the lane axis with a grid if batch ever exceeds 128.
    x_t = jnp.zeros((_FEATS, _LANES), jnp.float32).at[:, :B].set(x.T)   # layout plumbing
    slab = _pack_params(params)

    flops = 2 * B * sum(fin * fout for fin, fout in _DIMS)              # 2*B*108
    transcendentals = B * sum(fout for _, fout in _DIMS[:-1])           # B*14 sigmoids
    bytes_accessed = 3 * _FEATS * _LANES * 4                            # x + slab + out

    out = pl.pallas_call(
        mlp_kernel,
        out_shape=jax.ShapeDtypeStruct((_FEATS, _LANES), jnp.float32),
        grid=(),
        in_specs=[pl.BlockSpec((_FEATS, _LANES), lambda: (0, 0)),
                  pl.BlockSpec((_FEATS, _LANES), lambda: (0, 0))],
        out_specs=pl.BlockSpec((_FEATS, _LANES), lambda: (0, 0)),
        cost_estimate=pl.CostEstimate(flops=flops,
                                      transcendentals=transcendentals,
                                      bytes_accessed=bytes_accessed),
    )(x_t, slab)
    return out[:2, :B].T                                  # back to (B, 2)


def init_params(key):
    """nn.Linear default init: U(+/- 1/sqrt(fan_in)); torch (out, in) weight layout."""
    params = {}
    keys = jax.random.split(key, 2 * _N_LAYERS)
    for l, (fin, fout) in enumerate(_DIMS):
        bound = 1.0 / (fin ** 0.5)
        params[f"w{l}"] = jax.random.uniform(keys[2 * l], (fout, fin), jnp.float32,
                                             minval=-bound, maxval=bound)
        params[f"b{l}"] = jax.random.uniform(keys[2 * l + 1], (fout,), jnp.float32,
                                             minval=-bound, maxval=bound)
    return params


def mlp_reference(x, params):
    h = jax.nn.sigmoid(x @ params["w0"].T + params["b0"])
    h = jax.nn.sigmoid(h @ params["w1"].T + params["b1"])
    h = jax.nn.sigmoid(h @ params["w2"].T + params["b2"])
    return h @ params["w3"].T + params["b3"]


if __name__ == "__main__":
    key = jax.random.PRNGKey(0)
    k_x, k_p = jax.random.split(key)
    x = jax.random.uniform(k_x, (97, 8), jnp.float32)     # mirrors torch.rand((97, 8))
    params = init_params(k_p)

    out = jax.block_until_ready(mlp_forward(x, params))
    ref = mlp_reference(x, params)

    assert out.shape == (97, 2)
    assert jnp.allclose(out, ref, atol=1e-5, rtol=1e-5)

    print("KERNEL_OK")
</pallas_src>

<mosaic_0001>
module attributes {stable_mosaic.version = 11 : i64} {
  func.func @mlp_kernel(%arg0: memref<8x128xf32, #tpu.memory_space<vmem>>, %arg1: memref<8x128xf32, #tpu.memory_space<vmem>>, %arg2: memref<8x128xf32, #tpu.memory_space<vmem>>) attributes {dimension_semantics = [], scalar_prefetch = 0 : i64, scratch_operands = 0 : i64, tpu.core_type = #tpu.core_type<tc>} {
    %c0 = arith.constant 0 : index
    %c0_0 = arith.constant 0 : index
    %0 = vector.load %arg0[%c0, %c0_0] : memref<8x128xf32, #tpu.memory_space<vmem>>, vector<8x128xf32>
    %c0_1 = arith.constant 0 : index
    %c0_2 = arith.constant 0 : index
    %1 = vector.load %arg1[%c0_1, %c0_2] : memref<8x128xf32, #tpu.memory_space<vmem>>, vector<8x8xf32>
    %c0_3 = arith.constant 0 : index
    %c32 = arith.constant 32 : index
    %2 = vector.load %arg1[%c0_3, %c32] : memref<8x128xf32, #tpu.memory_space<vmem>>, vector<8x1xf32>
    %3 = vector.shape_cast %2 : vector<8x1xf32> to vector<8x1xf32>
    %4 = vector.broadcast %3 : vector<8x1xf32> to vector<8x128xf32>
    %5 = vector.extract_strided_slice %1 {offsets = [0, 0], sizes = [8, 1], strides = [1, 1]} : vector<8x8xf32> to vector<8x1xf32>
    %6 = vector.extract_strided_slice %0 {offsets = [0, 0], sizes = [1, 128], strides = [1, 1]} : vector<8x128xf32> to vector<1x128xf32>
    %7 = vector.broadcast %5 : vector<8x1xf32> to vector<8x128xf32>
    %8 = vector.broadcast %6 : vector<1x128xf32> to vector<8x128xf32>
    %9 = arith.mulf %7, %8 : vector<8x128xf32>
    %10 = arith.addf %4, %9 : vector<8x128xf32>
    %11 = vector.extract_strided_slice %1 {offsets = [0, 1], sizes = [8, 1], strides = [1, 1]} : vector<8x8xf32> to vector<8x1xf32>
    %12 = vector.extract_strided_slice %0 {offsets = [1, 0], sizes = [1, 128], strides = [1, 1]} : vector<8x128xf32> to vector<1x128xf32>
    %13 = vector.broadcast %11 : vector<8x1xf32> to vector<8x128xf32>
    %14 = vector.broadcast %12 : vector<1x128xf32> to vector<8x128xf32>
    %15 = arith.mulf %13, %14 : vector<8x128xf32>
    %16 = arith.addf %10, %15 : vector<8x128xf32>
    %17 = vector.extract_strided_slice %1 {offsets = [0, 2], sizes = [8, 1], strides = [1, 1]} : vector<8x8xf32> to vector<8x1xf32>
    %18 = vector.extract_strided_slice %0 {offsets = [2, 0], sizes = [1, 128], strides = [1, 1]} : vector<8x128xf32> to vector<1x128xf32>
    %19 = vector.broadcast %17 : vector<8x1xf32> to vector<8x128xf32>
    %20 = vector.broadcast %18 : vector<1x128xf32> to vector<8x128xf32>
    %21 = arith.mulf %19, %20 : vector<8x128xf32>
    %22 = arith.addf %16, %21 : vector<8x128xf32>
    %23 = vector.extract_strided_slice %1 {offsets = [0, 3], sizes = [8, 1], strides = [1, 1]} : vector<8x8xf32> to vector<8x1xf32>
    %24 = vector.extract_strided_slice %0 {offsets = [3, 0], sizes = [1, 128], strides = [1, 1]} : vector<8x128xf32> to vector<1x128xf32>
    %25 = vector.broadcast %23 : vector<8x1xf32> to vector<8x128xf32>
    %26 = vector.broadcast %24 : vector<1x128xf32> to vector<8x128xf32>
    %27 = arith.mulf %25, %26 : vector<8x128xf32>
    %28 = arith.addf %22, %27 : vector<8x128xf32>
    %29 = vector.extract_strided_slice %1 {offsets = [0, 4], sizes = [8, 1], strides = [1, 1]} : vector<8x8xf32> to vector<8x1xf32>
    %30 = vector.extract_strided_slice %0 {offsets = [4, 0], sizes = [1, 128], strides = [1, 1]} : vector<8x128xf32> to vector<1x128xf32>
    %31 = vector.broadcast %29 : vector<8x1xf32> to vector<8x128xf32>
    %32 = vector.broadcast %30 : vector<1x128xf32> to vector<8x128xf32>
    %33 = arith.mulf %31, %32 : vector<8x128xf32>
    %34 = arith.addf %28, %33 : vector<8x128xf32>
    %35 = vector.extract_strided_slice %1 {offsets = [0, 5], sizes = [8, 1], strides = [1, 1]} : vector<8x8xf32> to vector<8x1xf32>
    %36 = vector.extract_strided_slice %0 {offsets = [5, 0], sizes = [1, 128], strides = [1, 1]} : vector<8x128xf32> to vector<1x128xf32>
    %37 = vector.broadcast %35 : vector<8x1xf32> to vector<8x128xf32>
    %38 = vector.broadcast %36 : vector<1x128xf32> to vector<8x128xf32>
    %39 = arith.mulf %37, %38 : vector<8x128xf32>
    %40 = arith.addf %34, %39 : vector<8x128xf32>
    %41 = vector.extract_strided_slice %1 {offsets = [0, 6], sizes = [8, 1], strides = [1, 1]} : vector<8x8xf32> to vector<8x1xf32>
    %42 = vector.extract_strided_slice %0 {offsets = [6, 0], sizes = [1, 128], strides = [1, 1]} : vector<8x128xf32> to vector<1x128xf32>
    %43 = vector.broadcast %41 : vector<8x1xf32> to vector<8x128xf32>
    %44 = vector.broadcast %42 : vector<1x128xf32> to vector<8x128xf32>
    %45 = arith.mulf %43, %44 : vector<8x128xf32>
    %46 = arith.addf %40, %45 : vector<8x128xf32>
    %47 = vector.extract_strided_slice %1 {offsets = [0, 7], sizes = [8, 1], strides = [1, 1]} : vector<8x8xf32> to vector<8x1xf32>
    %48 = vector.extract_strided_slice %0 {offsets = [7, 0], sizes = [1, 128], strides = [1, 1]} : vector<8x128xf32> to vector<1x128xf32>
    %49 = vector.broadcast %47 : vector<8x1xf32> to vector<8x128xf32>
    %50 = vector.broadcast %48 : vector<1x128xf32> to vector<8x128xf32>
    %51 = arith.mulf %49, %50 : vector<8x128xf32>
    %52 = arith.addf %46, %51 : vector<8x128xf32>
    %cst = arith.constant 5.000000e-01 : f32
    %53 = vector.broadcast %cst : f32 to vector<8x128xf32>
    %54 = arith.mulf %53, %52 : vector<8x128xf32>
    %55 = math.tanh %54 : vector<8x128xf32>
    %cst_4 = arith.constant 1.000000e+00 : f32
    %56 = vector.broadcast %cst_4 : f32 to vector<8x128xf32>
    %57 = arith.addf %55, %56 : vector<8x128xf32>
    %cst_5 = arith.constant 5.000000e-01 : f32
    %58 = vector.broadcast %cst_5 : f32 to vector<8x128xf32>
    %59 = arith.mulf %58, %57 : vector<8x128xf32>
    %c0_6 = arith.constant 0 : index
    %c8 = arith.constant 8 : index
    %60 = vector.load %arg1[%c0_6, %c8] : memref<8x128xf32, #tpu.memory_space<vmem>>, vector<8x8xf32>
    %c0_7 = arith.constant 0 : index
    %c33 = arith.constant 33 : index
    %61 = vector.load %arg1[%c0_7, %c33] : memref<8x128xf32, #tpu.memory_space<vmem>>, vector<8x1xf32>
    %62 = vector.shape_cast %61 : vector<8x1xf32> to vector<8x1xf32>
    %63 = vector.broadcast %62 : vector<8x1xf32> to vector<8x128xf32>
    %64 = vector.extract_strided_slice %60 {offsets = [0, 0], sizes = [8, 1], strides = [1, 1]} : vector<8x8xf32> to vector<8x1xf32>
    %65 = vector.extract_strided_slice %59 {offsets = [0, 0], sizes = [1, 128], strides = [1, 1]} : vector<8x128xf32> to vector<1x128xf32>
    %66 = vector.broadcast %64 : vector<8x1xf32> to vector<8x128xf32>
    %67 = vector.broadcast %65 : vector<1x128xf32> to vector<8x128xf32>
    %68 = arith.mulf %66, %67 : vector<8x128xf32>
    %69 = arith.addf %63, %68 : vector<8x128xf32>
    %70 = vector.extract_strided_slice %60 {offsets = [0, 1], sizes = [8, 1], strides = [1, 1]} : vector<8x8xf32> to vector<8x1xf32>
    %71 = vector.extract_strided_slice %59 {offsets = [1, 0], sizes = [1, 128], strides = [1, 1]} : vector<8x128xf32> to vector<1x128xf32>
    %72 = vector.broadcast %70 : vector<8x1xf32> to vector<8x128xf32>
    %73 = vector.broadcast %71 : vector<1x128xf32> to vector<8x128xf32>
    %74 = arith.mulf %72, %73 : vector<8x128xf32>
    %75 = arith.addf %69, %74 : vector<8x128xf32>
    %76 = vector.extract_strided_slice %60 {offsets = [0, 2], sizes = [8, 1], strides = [1, 1]} : vector<8x8xf32> to vector<8x1xf32>
    %77 = vector.extract_strided_slice %59 {offsets = [2, 0], sizes = [1, 128], strides = [1, 1]} : vector<8x128xf32> to vector<1x128xf32>
    %78 = vector.broadcast %76 : vector<8x1xf32> to vector<8x128xf32>
    %79 = vector.broadcast %77 : vector<1x128xf32> to vector<8x128xf32>
    %80 = arith.mulf %78, %79 : vector<8x128xf32>
    %81 = arith.addf %75, %80 : vector<8x128xf32>
    %82 = vector.extract_strided_slice %60 {offsets = [0, 3], sizes = [8, 1], strides = [1, 1]} : vector<8x8xf32> to vector<8x1xf32>
    %83 = vector.extract_strided_slice %59 {offsets = [3, 0], sizes = [1, 128], strides = [1, 1]} : vector<8x128xf32> to vector<1x128xf32>
    %84 = vector.broadcast %82 : vector<8x1xf32> to vector<8x128xf32>
    %85 = vector.broadcast %83 : vector<1x128xf32> to vector<8x128xf32>
    %86 = arith.mulf %84, %85 : vector<8x128xf32>
    %87 = arith.addf %81, %86 : vector<8x128xf32>
    %88 = vector.extract_strided_slice %60 {offsets = [0, 4], sizes = [8, 1], strides = [1, 1]} : vector<8x8xf32> to vector<8x1xf32>
    %89 = vector.extract_strided_slice %59 {offsets = [4, 0], sizes = [1, 128], strides = [1, 1]} : vector<8x128xf32> to vector<1x128xf32>
    %90 = vector.broadcast %88 : vector<8x1xf32> to vector<8x128xf32>
    %91 = vector.broadcast %89 : vector<1x128xf32> to vector<8x128xf32>
    %92 = arith.mulf %90, %91 : vector<8x128xf32>
    %93 = arith.addf %87, %92 : vector<8x128xf32>
    %94 = vector.extract_strided_slice %60 {offsets = [0, 5], sizes = [8, 1], strides = [1, 1]} : vector<8x8xf32> to vector<8x1xf32>
    %95 = vector.extract_strided_slice %59 {offsets = [5, 0], sizes = [1, 128], strides = [1, 1]} : vector<8x128xf32> to vector<1x128xf32>
    %96 = vector.broadcast %94 : vector<8x1xf32> to vector<8x128xf32>
    %97 = vector.broadcast %95 : vector<1x128xf32> to vector<8x128xf32>
    %98 = arith.mulf %96, %97 : vector<8x128xf32>
    %99 = arith.addf %93, %98 : vector<8x128xf32>
    %100 = vector.extract_strided_slice %60 {offsets = [0, 6], sizes = [8, 1], strides = [1, 1]} : vector<8x8xf32> to vector<8x1xf32>
    %101 = vector.extract_strided_slice %59 {offsets = [6, 0], sizes = [1, 128], strides = [1, 1]} : vector<8x128xf32> to vector<1x128xf32>
    %102 = vector.broadcast %100 : vector<8x1xf32> to vector<8x128xf32>
    %103 = vector.broadcast %101 : vector<1x128xf32> to vector<8x128xf32>
    %104 = arith.mulf %102, %103 : vector<8x128xf32>
    %105 = arith.addf %99, %104 : vector<8x128xf32>
    %106 = vector.extract_strided_slice %60 {offsets = [0, 7], sizes = [8, 1], strides = [1, 1]} : vector<8x8xf32> to vector<8x1xf32>
    %107 = vector.extract_strided_slice %59 {offsets = [7, 0], sizes = [1, 128], strides = [1, 1]} : vector<8x128xf32> to vector<1x128xf32>
    %108 = vector.broadcast %106 : vector<8x1xf32> to vector<8x128xf32>
    %109 = vector.broadcast %107 : vector<1x128xf32> to vector<8x128xf32>
    %110 = arith.mulf %108, %109 : vector<8x128xf32>
    %111 = arith.addf %105, %110 : vector<8x128xf32>
    %cst_8 = arith.constant 5.000000e-01 : f32
    %112 = vector.broadcast %cst_8 : f32 to vector<8x128xf32>
    %113 = arith.mulf %112, %111 : vector<8x128xf32>
    %114 = math.tanh %113 : vector<8x128xf32>
    %cst_9 = arith.constant 1.000000e+00 : f32
    %115 = vector.broadcast %cst_9 : f32 to vector<8x128xf32>
    %116 = arith.addf %114, %115 : vector<8x128xf32>
    %cst_10 = arith.constant 5.000000e-01 : f32
    %117 = vector.broadcast %cst_10 : f32 to vector<8x128xf32>
    %118 = arith.mulf %117, %116 : vector<8x128xf32>
    %c0_11 = arith.constant 0 : index
    %c16 = arith.constant 16 : index
    %119 = vector.load %arg1[%c0_11, %c16] : memref<8x128xf32, #tpu.memory_space<vmem>>, vector<8x8xf32>
    %c0_12 = arith.constant 0 : index
    %c34 = arith.constant 34 : index
    %120 = vector.load %arg1[%c0_12, %c34] : memref<8x128xf32, #tpu.memory_space<vmem>>, vector<8x1xf32>
    %121 = vector.shape_cast %120 : vector<8x1xf32> to vector<8x1xf32>
    %122 = vector.broadcast %121 : vector<8x1xf32> to vector<8x128xf32>
    %123 = vector.extract_strided_slice %119 {offsets = [0, 0], sizes = [8, 1], strides = [1, 1]} : vector<8x8xf32> to vector<8x1xf32>
    %124 = vector.extract_strided_slice %118 {offsets = [0, 0], sizes = [1, 128], strides = [1, 1]} : vector<8x128xf32> to vector<1x128xf32>
    %125 = vector.broadcast %123 : vector<8x1xf32> to vector<8x128xf32>
    %126 = vector.broadcast %124 : vector<1x128xf32> to vector<8x128xf32>
    %127 = arith.mulf %125, %126 : vector<8x128xf32>
    %128 = arith.addf %122, %127 : vector<8x128xf32>
    %129 = vector.extract_strided_slice %119 {offsets = [0, 1], sizes = [8, 1], strides = [1, 1]} : vector<8x8xf32> to vector<8x1xf32>
    %130 = vector.extract_strided_slice %118 {offsets = [1, 0], sizes = [1, 128], strides = [1, 1]} : vector<8x128xf32> to vector<1x128xf32>
    %131 = vector.broadcast %129 : vector<8x1xf32> to vector<8x128xf32>
    %132 = vector.broadcast %130 : vector<1x128xf32> to vector<8x128xf32>
    %133 = arith.mulf %131, %132 : vector<8x128xf32>
    %134 = arith.addf %128, %133 : vector<8x128xf32>
    %135 = vector.extract_strided_slice %119 {offsets = [0, 2], sizes = [8, 1], strides = [1, 1]} : vector<8x8xf32> to vector<8x1xf32>
    %136 = vector.extract_strided_slice %118 {offsets = [2, 0], sizes = [1, 128], strides = [1, 1]} : vector<8x128xf32> to vector<1x128xf32>
    %137 = vector.broadcast %135 : vector<8x1xf32> to vector<8x128xf32>
    %138 = vector.broadcast %136 : vector<1x128xf32> to vector<8x128xf32>
    %139 = arith.mulf %137, %138 : vector<8x128xf32>
    %140 = arith.addf %134, %139 : vector<8x128xf32>
    %141 = vector.extract_strided_slice %119 {offsets = [0, 3], sizes = [8, 1], strides = [1, 1]} : vector<8x8xf32> to vector<8x1xf32>
    %142 = vector.extract_strided_slice %118 {offsets = [3, 0], sizes = [1, 128], strides = [1, 1]} : vector<8x128xf32> to vector<1x128xf32>
    %143 = vector.broadcast %141 : vector<8x1xf32> to vector<8x128xf32>
    %144 = vector.broadcast %142 : vector<1x128xf32> to vector<8x128xf32>
    %145 = arith.mulf %143, %144 : vector<8x128xf32>
    %146 = arith.addf %140, %145 : vector<8x128xf32>
    %147 = vector.extract_strided_slice %119 {offsets = [0, 4], sizes = [8, 1], strides = [1, 1]} : vector<8x8xf32> to vector<8x1xf32>
    %148 = vector.extract_strided_slice %118 {offsets = [4, 0], sizes = [1, 128], strides = [1, 1]} : vector<8x128xf32> to vector<1x128xf32>
    %149 = vector.broadcast %147 : vector<8x1xf32> to vector<8x128xf32>
    %150 = vector.broadcast %148 : vector<1x128xf32> to vector<8x128xf32>
    %151 = arith.mulf %149, %150 : vector<8x128xf32>
    %152 = arith.addf %146, %151 : vector<8x128xf32>
    %153 = vector.extract_strided_slice %119 {offsets = [0, 5], sizes = [8, 1], strides = [1, 1]} : vector<8x8xf32> to vector<8x1xf32>
    %154 = vector.extract_strided_slice %118 {offsets = [5, 0], sizes = [1, 128], strides = [1, 1]} : vector<8x128xf32> to vector<1x128xf32>
    %155 = vector.broadcast %153 : vector<8x1xf32> to vector<8x128xf32>
    %156 = vector.broadcast %154 : vector<1x128xf32> to vector<8x128xf32>
    %157 = arith.mulf %155, %156 : vector<8x128xf32>
    %158 = arith.addf %152, %157 : vector<8x128xf32>
    %159 = vector.extract_strided_slice %119 {offsets = [0, 6], sizes = [8, 1], strides = [1, 1]} : vector<8x8xf32> to vector<8x1xf32>
    %160 = vector.extract_strided_slice %118 {offsets = [6, 0], sizes = [1, 128], strides = [1, 1]} : vector<8x128xf32> to vector<1x128xf32>
    %161 = vector.broadcast %159 : vector<8x1xf32> to vector<8x128xf32>
    %162 = vector.broadcast %160 : vector<1x128xf32> to vector<8x128xf32>
    %163 = arith.mulf %161, %162 : vector<8x128xf32>
    %164 = arith.addf %158, %163 : vector<8x128xf32>
    %165 = vector.extract_strided_slice %119 {offsets = [0, 7], sizes = [8, 1], strides = [1, 1]} : vector<8x8xf32> to vector<8x1xf32>
    %166 = vector.extract_strided_slice %118 {offsets = [7, 0], sizes = [1, 128], strides = [1, 1]} : vector<8x128xf32> to vector<1x128xf32>
    %167 = vector.broadcast %165 : vector<8x1xf32> to vector<8x128xf32>
    %168 = vector.broadcast %166 : vector<1x128xf32> to vector<8x128xf32>
    %169 = arith.mulf %167, %168 : vector<8x128xf32>
    %170 = arith.addf %164, %169 : vector<8x128xf32>
    %cst_13 = arith.constant 5.000000e-01 : f32
    %171 = vector.broadcast %cst_13 : f32 to vector<8x128xf32>
    %172 = arith.mulf %171, %170 : vector<8x128xf32>
    %173 = math.tanh %172 : vector<8x128xf32>
    %cst_14 = arith.constant 1.000000e+00 : f32
    %174 = vector.broadcast %cst_14 : f32 to vector<8x128xf32>
    %175 = arith.addf %173, %174 : vector<8x128xf32>
    %cst_15 = arith.constant 5.000000e-01 : f32
    %176 = vector.broadcast %cst_15 : f32 to vector<8x128xf32>
    %177 = arith.mulf %176, %175 : vector<8x128xf32>
    %c0_16 = arith.constant 0 : index
    %c24 = arith.constant 24 : index
    %178 = vector.load %arg1[%c0_16, %c24] : memref<8x128xf32, #tpu.memory_space<vmem>>, vector<8x8xf32>
    %c0_17 = arith.constant 0 : index
    %c35 = arith.constant 35 : index
    %179 = vector.load %arg1[%c0_17, %c35] : memref<8x128xf32, #tpu.memory_space<vmem>>, vector<8x1xf32>
    %180 = vector.shape_cast %179 : vector<8x1xf32> to vector<8x1xf32>
    %181 = vector.broadcast %180 : vector<8x1xf32> to vector<8x128xf32>
    %182 = vector.extract_strided_slice %178 {offsets = [0, 0], sizes = [8, 1], strides = [1, 1]} : vector<8x8xf32> to vector<8x1xf32>
    %183 = vector.extract_strided_slice %177 {offsets = [0, 0], sizes = [1, 128], strides = [1, 1]} : vector<8x128xf32> to vector<1x128xf32>
    %184 = vector.broadcast %182 : vector<8x1xf32> to vector<8x128xf32>
    %185 = vector.broadcast %183 : vector<1x128xf32> to vector<8x128xf32>
    %186 = arith.mulf %184, %185 : vector<8x128xf32>
    %187 = arith.addf %181, %186 : vector<8x128xf32>
    %188 = vector.extract_strided_slice %178 {offsets = [0, 1], sizes = [8, 1], strides = [1, 1]} : vector<8x8xf32> to vector<8x1xf32>
    %189 = vector.extract_strided_slice %177 {offsets = [1, 0], sizes = [1, 128], strides = [1, 1]} : vector<8x128xf32> to vector<1x128xf32>
    %190 = vector.broadcast %188 : vector<8x1xf32> to vector<8x128xf32>
    %191 = vector.broadcast %189 : vector<1x128xf32> to vector<8x128xf32>
    %192 = arith.mulf %190, %191 : vector<8x128xf32>
    %193 = arith.addf %187, %192 : vector<8x128xf32>
    %194 = vector.extract_strided_slice %178 {offsets = [0, 2], sizes = [8, 1], strides = [1, 1]} : vector<8x8xf32> to vector<8x1xf32>
    %195 = vector.extract_strided_slice %177 {offsets = [2, 0], sizes = [1, 128], strides = [1, 1]} : vector<8x128xf32> to vector<1x128xf32>
    %196 = vector.broadcast %194 : vector<8x1xf32> to vector<8x128xf32>
    %197 = vector.broadcast %195 : vector<1x128xf32> to vector<8x128xf32>
    %198 = arith.mulf %196, %197 : vector<8x128xf32>
    %199 = arith.addf %193, %198 : vector<8x128xf32>
    %200 = vector.extract_strided_slice %178 {offsets = [0, 3], sizes = [8, 1], strides = [1, 1]} : vector<8x8xf32> to vector<8x1xf32>
    %201 = vector.extract_strided_slice %177 {offsets = [3, 0], sizes = [1, 128], strides = [1, 1]} : vector<8x128xf32> to vector<1x128xf32>
    %202 = vector.broadcast %200 : vector<8x1xf32> to vector<8x128xf32>
    %203 = vector.broadcast %201 : vector<1x128xf32> to vector<8x128xf32>
    %204 = arith.mulf %202, %203 : vector<8x128xf32>
    %205 = arith.addf %199, %204 : vector<8x128xf32>
    %206 = vector.extract_strided_slice %178 {offsets = [0, 4], sizes = [8, 1], strides = [1, 1]} : vector<8x8xf32> to vector<8x1xf32>
    %207 = vector.extract_strided_slice %177 {offsets = [4, 0], sizes = [1, 128], strides = [1, 1]} : vector<8x128xf32> to vector<1x128xf32>
    %208 = vector.broadcast %206 : vector<8x1xf32> to vector<8x128xf32>
    %209 = vector.broadcast %207 : vector<1x128xf32> to vector<8x128xf32>
    %210 = arith.mulf %208, %209 : vector<8x128xf32>
    %211 = arith.addf %205, %210 : vector<8x128xf32>
    %212 = vector.extract_strided_slice %178 {offsets = [0, 5], sizes = [8, 1], strides = [1, 1]} : vector<8x8xf32> to vector<8x1xf32>
    %213 = vector.extract_strided_slice %177 {offsets = [5, 0], sizes = [1, 128], strides = [1, 1]} : vector<8x128xf32> to vector<1x128xf32>
    %214 = vector.broadcast %212 : vector<8x1xf32> to vector<8x128xf32>
    %215 = vector.broadcast %213 : vector<1x128xf32> to vector<8x128xf32>
    %216 = arith.mulf %214, %215 : vector<8x128xf32>
    %217 = arith.addf %211, %216 : vector<8x128xf32>
    %218 = vector.extract_strided_slice %178 {offsets = [0, 6], sizes = [8, 1], strides = [1, 1]} : vector<8x8xf32> to vector<8x1xf32>
    %219 = vector.extract_strided_slice %177 {offsets = [6, 0], sizes = [1, 128], strides = [1, 1]} : vector<8x128xf32> to vector<1x128xf32>
    %220 = vector.broadcast %218 : vector<8x1xf32> to vector<8x128xf32>
    %221 = vector.broadcast %219 : vector<1x128xf32> to vector<8x128xf32>
    %222 = arith.mulf %220, %221 : vector<8x128xf32>
    %223 = arith.addf %217, %222 : vector<8x128xf32>
    %224 = vector.extract_strided_slice %178 {offsets = [0, 7], sizes = [8, 1], strides = [1, 1]} : vector<8x8xf32> to vector<8x1xf32>
    %225 = vector.extract_strided_slice %177 {offsets = [7, 0], sizes = [1, 128], strides = [1, 1]} : vector<8x128xf32> to vector<1x128xf32>
    %226 = vector.broadcast %224 : vector<8x1xf32> to vector<8x128xf32>
    %227 = vector.broadcast %225 : vector<1x128xf32> to vector<8x128xf32>
    %228 = arith.mulf %226, %227 : vector<8x128xf32>
    %229 = arith.addf %223, %228 : vector<8x128xf32>
    %c0_18 = arith.constant 0 : index
    %c0_19 = arith.constant 0 : index
    %230 = vector.load %arg2[%c0_18, %c0_19] : memref<8x128xf32, #tpu.memory_space<vmem>>, vector<8x128xf32>
    tpu.vector_store %arg2[%c0_18, %c0_19], %229 {strides = array<i32>} : memref<8x128xf32, #tpu.memory_space<vmem>>, vector<8x128xf32>,
    return
  }
}

</mosaic_0001>

<llo_original>
// kernel: tpu_custom_call.1
$region0: #{tpu_custom_call.1}
  #allocation0 [shape = 'u32[]', space=smem, size = 0x4, offset = 0x4, fixed_abs, tag = 'smem constant byte address 0x4 - core index']
  #allocation1 [shape = 'u32[144,128]{1,0:T(1,128)}', space=vmem, size = 0x12000, scoped, tag = 'internal scratch']
  %s0 = inlined_call_operand.hbm [shape: f32[8,128], index: 0, kind: input, shape index: {}]
  %s1 = inlined_call_operand.hbm [shape: f32[8,128], index: 1, kind: input, shape index: {}]
  %s2 = inlined_call_operand.hbm [shape: f32[8,128], index: 2, kind: output, shape index: {}]
  %s3 = sld [smem:[#allocation0]]
  $region26: #{tpu_custom_call.1} parent=0
    _
  %s5 = ssub.s32 1, %s3
  %s6 = scalar_select 0, %s5, %s3
  $region1: #{tpu_custom_call.1} parent=0
    #allocation2 [shape = 'u8[4096]{0}', space=vmem, size = 0x1000, scoped, tag = 'input window, operand 0, single buffered']
    #allocation3 [shape = 's32[1]{0}', space=sflag, size = 0x4, scoped, tag = 'scoped memory for tpu_custom_call.1']
    #allocation4 [shape = 's32[1]{0}', space=sflag, size = 0x4, scoped, tag = 'scoped memory for tpu_custom_call.1']
    #allocation5 [shape = 'u8[4096]{0}', space=vmem, size = 0x1000, scoped, tag = 'input window, operand 1, single buffered']
    #allocation6 [shape = 's32[1]{0}', space=sflag, size = 0x4, scoped, tag = 'scoped memory for tpu_custom_call.1']
    #allocation7 [shape = 'u8[4096]{0}', space=vmem, size = 0x1000, scoped, tag = 'output window, operand 0, single buffered']
    %7 = vsyncpa [#allocation3], 0
    %8 = vsyncpa [#allocation6], 0
    %9 = vsyncpa [#allocation4], 0
    // Predicated region
    $region2: #{tpu_custom_call.1} parent=1 // pred_check
      _
    $region3: #{tpu_custom_call.1} parent=1 // pred_check_branch
      %11 = sbr.rel (0) target = $region5
    $region4: #{tpu_custom_call.1} parent=1 // pred_region
      %s13 = ssub.s32 128, 128
      %14 = vsyncadd [#allocation3], %s13
      %s16 = sshll.u32 [#allocation2], 4
      %s17 = int_to_ptr.vmem [resolvable:$true] %s16
      %19 = dma.hbm_to_vmem [thread:$0]  %s0, 128, %s17, [#allocation3]
    $region5: #{tpu_custom_call.1} parent=1 // pred_fallthru
      _
    // Predicated region
    $region6: #{tpu_custom_call.1} parent=1 // pred_check
      _
    $region7: #{tpu_custom_call.1} parent=1 // pred_check_branch
      %21 = sbr.rel (0) target = $region9
    $region8: #{tpu_custom_call.1} parent=1 // pred_region
      %s23 = ssub.s32 128, 128
      %24 = vsyncadd [#allocation6], %s23
      %s26 = sshll.u32 [#allocation5], 4
      %s27 = int_to_ptr.vmem [resolvable:$true] %s26
      %29 = dma.hbm_to_vmem [thread:$0]  %s1, 128, %s27, [#allocation6]
    $region9: #{tpu_custom_call.1} parent=1 // pred_fallthru
      _
    // Predicated region
    $region10: #{tpu_custom_call.1} parent=1 // pred_check
      _
    $region11: #{tpu_custom_call.1} parent=1 // pred_check_branch
      %31 = sbr.rel (0) target = $region13
    $region12: #{tpu_custom_call.1} parent=1 // pred_region
      %32 = dma.done [#allocation3], 128
    $region13: #{tpu_custom_call.1} parent=1 // pred_fallthru
      _
    // Predicated region
    $region14: #{tpu_custom_call.1} parent=1 // pred_check
      _
    $region15: #{tpu_custom_call.1} parent=1 // pred_check_branch
      %34 = sbr.rel (0) target = $region17
    $region16: #{tpu_custom_call.1} parent=1 // pred_region
      %35 = dma.done [#allocation6], 128
    $region17: #{tpu_custom_call.1} parent=1 // pred_fallthru
      _
    %v36 = vld [vmem:[#allocation2] sm:$0xff]
    %v37 = vld [vmem:[#allocation5] sm:$0xff]
    %39 = vset.pattern.permute.xlu0 32
    %40 = vperm.xlu0 %39, %v37
    %v41 = vpop.permute.xlu0 %40
    %43 = vset.pattern.permute.xlu0 0
    %44 = vperm.xlu0 %43, %v37
    %v45 = vpop.permute.xlu0 %44
    %v47 = vlaneseq
    %v48 = vshrl.u32 %v47, 7
    %v49 = vsub.s32 0, %v48
    %v50 = vrot.slane %v36, %v49
    %v51 = vmul.f32 %v45, %v50
    %v52 = vadd.f32 %v41, %v51
    %53 = vset.pattern.permute.xlu0 1
    %54 = vperm.xlu0 %53, %v37
    %v55 = vpop.permute.xlu0 %54
    %v57 = vlaneseq
    %v58 = vshrl.u32 %v57, 7
    %v59 = vsub.s32 1, %v58
    %v60 = vrot.slane %v36, %v59
    %v61 = vmul.f32 %v55, %v60
    %v62 = vadd.f32 %v52, %v61
    %63 = vset.pattern.permute.xlu0 2
    %64 = vperm.xlu0 %63, %v37
    %v65 = vpop.permute.xlu0 %64
    %v67 = vlaneseq
    %v68 = vshrl.u32 %v67, 7
    %v69 = vsub.s32 2, %v68
    %v70 = vrot.slane %v36, %v69
    %v71 = vmul.f32 %v65, %v70
    %v72 = vadd.f32 %v62, %v71
    %73 = vset.pattern.permute.xlu0 3
    %74 = vperm.xlu0 %73, %v37
    %v75 = vpop.permute.xlu0 %74
    %v77 = vlaneseq
    %v78 = vshrl.u32 %v77, 7
    %v79 = vsub.s32 3, %v78
    %v80 = vrot.slane %v36, %v79
    %v81 = vmul.f32 %v75, %v80
    %v82 = vadd.f32 %v72, %v81
    %83 = vset.pattern.permute.xlu0 4
    %84 = vperm.xlu0 %83, %v37
    %v85 = vpop.permute.xlu0 %84
    %v87 = vlaneseq
    %v88 = vshrl.u32 %v87, 7
    %v89 = vsub.s32 4, %v88
    %v90 = vrot.slane %v36, %v89
    %v91 = vmul.f32 %v85, %v90
    %v92 = vadd.f32 %v82, %v91
    %93 = vset.pattern.permute.xlu0 5
    %94 = vperm.xlu0 %93, %v37
    %v95 = vpop.permute.xlu0 %94
    %v97 = vlaneseq
    %v98 = vshrl.u32 %v97, 7
    %v99 = vsub.s32 5, %v98
    %v100 = vrot.slane %v36, %v99
    %v101 = vmul.f32 %v95, %v100
    %v102 = vadd.f32 %v92, %v101
    %103 = vset.pattern.permute.xlu0 6
    %104 = vperm.xlu0 %103, %v37
    %v105 = vpop.permute.xlu0 %104
    %v107 = vlaneseq
    %v108 = vshrl.u32 %v107, 7
    %v109 = vsub.s32 6, %v108
    %v110 = vrot.slane %v36, %v109
    %v111 = vmul.f32 %v105, %v110
    %v112 = vadd.f32 %v102, %v111
    %113 = vset.pattern.permute.xlu0 7
    %114 = vperm.xlu0 %113, %v37
    %v115 = vpop.permute.xlu0 %114
    %v117 = vlaneseq
    %v118 = vshrl.u32 %v117, 7
    %v119 = vsub.s32 7, %v118
    %v120 = vrot.slane %v36, %v119
    %v121 = vmul.f32 %v115, %v120
    %v122 = vadd.f32 %v112, %v121
    %v123 = vmul.f32 %v122, 0.5
    %v124 = vtanh.pop %v123
    %v125 = vadd.f32 %v124, 1.0
    %v126 = vmul.f32 %v125, 0.5
    %127 = vset.pattern.permute.xlu0 33
    %128 = vperm.xlu0 %127, %v37
    %v129 = vpop.permute.xlu0 %128
    %131 = vset.pattern.permute.xlu0 8
    %132 = vperm.xlu0 %131, %v37
    %v133 = vpop.permute.xlu0 %132
    %v135 = vlaneseq
    %v136 = vshrl.u32 %v135, 7
    %v137 = vsub.s32 0, %v136
    %v138 = vrot.slane %v126, %v137
    %v139 = vmul.f32 %v133, %v138
    %v140 = vadd.f32 %v129, %v139
    %141 = vset.pattern.permute.xlu0 9
    %142 = vperm.xlu0 %141, %v37
    %v143 = vpop.permute.xlu0 %142
    %v145 = vlaneseq
    %v146 = vshrl.u32 %v145, 7
    %v147 = vsub.s32 1, %v146
    %v148 = vrot.slane %v126, %v147
    %v149 = vmul.f32 %v143, %v148
    %v150 = vadd.f32 %v140, %v149
    %151 = vset.pattern.permute.xlu0 10
    %152 = vperm.xlu0 %151, %v37
    %v153 = vpop.permute.xlu0 %152
    %v155 = vlaneseq
    %v156 = vshrl.u32 %v155, 7
    %v157 = vsub.s32 2, %v156
    %v158 = vrot.slane %v126, %v157
    %v159 = vmul.f32 %v153, %v158
    %v160 = vadd.f32 %v150, %v159
    %161 = vset.pattern.permute.xlu0 11
    %162 = vperm.xlu0 %161, %v37
    %v163 = vpop.permute.xlu0 %162
    %v165 = vlaneseq
    %v166 = vshrl.u32 %v165, 7
    %v167 = vsub.s32 3, %v166
    %v168 = vrot.slane %v126, %v167
    %v169 = vmul.f32 %v163, %v168
    %v170 = vadd.f32 %v160, %v169
    %171 = vset.pattern.permute.xlu0 12
    %172 = vperm.xlu0 %171, %v37
    %v173 = vpop.permute.xlu0 %172
    %v175 = vlaneseq
    %v176 = vshrl.u32 %v175, 7
    %v177 = vsub.s32 4, %v176
    %v178 = vrot.slane %v126, %v177
    %v179 = vmul.f32 %v173, %v178
    %v180 = vadd.f32 %v170, %v179
    %181 = vset.pattern.permute.xlu0 13
    %182 = vperm.xlu0 %181, %v37
    %v183 = vpop.permute.xlu0 %182
    %v185 = vlaneseq
    %v186 = vshrl.u32 %v185, 7
    %v187 = vsub.s32 5, %v186
    %v188 = vrot.slane %v126, %v187
    %v189 = vmul.f32 %v183, %v188
    %v190 = vadd.f32 %v180, %v189
    %191 = vset.pattern.permute.xlu0 14
    %192 = vperm.xlu0 %191, %v37
    %v193 = vpop.permute.xlu0 %192
    %v195 = vlaneseq
    %v196 = vshrl.u32 %v195, 7
    %v197 = vsub.s32 6, %v196
    %v198 = vrot.slane %v126, %v197
    %v199 = vmul.f32 %v193, %v198
    %v200 = vadd.f32 %v190, %v199
    %201 = vset.pattern.permute.xlu0 15
    %202 = vperm.xlu0 %201, %v37
    %v203 = vpop.permute.xlu0 %202
    %v205 = vlaneseq
    %v206 = vshrl.u32 %v205, 7
    %v207 = vsub.s32 7, %v206
    %v208 = vrot.slane %v126, %v207
    %v209 = vmul.f32 %v203, %v208
    %v210 = vadd.f32 %v200, %v209
    %v211 = vmul.f32 %v210, 0.5
    %v212 = vtanh.pop %v211
    %v213 = vadd.f32 %v212, 1.0
    %v214 = vmul.f32 %v213, 0.5
    %215 = vset.pattern.permute.xlu0 34
    %216 = vperm.xlu0 %215, %v37
    %v217 = vpop.permute.xlu0 %216
    %219 = vset.pattern.permute.xlu0 16
    %220 = vperm.xlu0 %219, %v37
    %v221 = vpop.permute.xlu0 %220
    %v223 = vlaneseq
    %v224 = vshrl.u32 %v223, 7
    %v225 = vsub.s32 0, %v224
    %v226 = vrot.slane %v214, %v225
    %v227 = vmul.f32 %v221, %v226
    %v228 = vadd.f32 %v217, %v227
    %229 = vset.pattern.permute.xlu0 17
    %230 = vperm.xlu0 %229, %v37
    %v231 = vpop.permute.xlu0 %230
    %v233 = vlaneseq
    %v234 = vshrl.u32 %v233, 7
    %v235 = vsub.s32 1, %v234
    %v236 = vrot.slane %v214, %v235
    %v237 = vmul.f32 %v231, %v236
    %v238 = vadd.f32 %v228, %v237
    %239 = vset.pattern.permute.xlu0 18
    %240 = vperm.xlu0 %239, %v37
    %v241 = vpop.permute.xlu0 %240
    %v243 = vlaneseq
    %v244 = vshrl.u32 %v243, 7
    %v245 = vsub.s32 2, %v244
    %v246 = vrot.slane %v214, %v245
    %v247 = vmul.f32 %v241, %v246
    %v248 = vadd.f32 %v238, %v247
    %249 = vset.pattern.permute.xlu0 19
    %250 = vperm.xlu0 %249, %v37
    %v251 = vpop.permute.xlu0 %250
    %v253 = vlaneseq
    %v254 = vshrl.u32 %v253, 7
    %v255 = vsub.s32 3, %v254
    %v256 = vrot.slane %v214, %v255
    %v257 = vmul.f32 %v251, %v256
    %v258 = vadd.f32 %v248, %v257
    %259 = vset.pattern.permute.xlu0 20
    %260 = vperm.xlu0 %259, %v37
    %v261 = vpop.permute.xlu0 %260
    %v263 = vlaneseq
    %v264 = vshrl.u32 %v263, 7
    %v265 = vsub.s32 4, %v264
    %v266 = vrot.slane %v214, %v265
    %v267 = vmul.f32 %v261, %v266
    %v268 = vadd.f32 %v258, %v267
    %269 = vset.pattern.permute.xlu0 21
    %270 = vperm.xlu0 %269, %v37
    %v271 = vpop.permute.xlu0 %270
    %v273 = vlaneseq
    %v274 = vshrl.u32 %v273, 7
    %v275 = vsub.s32 5, %v274
    %v276 = vrot.slane %v214, %v275
    %v277 = vmul.f32 %v271, %v276
    %v278 = vadd.f32 %v268, %v277
    %279 = vset.pattern.permute.xlu0 22
    %280 = vperm.xlu0 %279, %v37
    %v281 = vpop.permute.xlu0 %280
    %v283 = vlaneseq
    %v284 = vshrl.u32 %v283, 7
    %v285 = vsub.s32 6, %v284
    %v286 = vrot.slane %v214, %v285
    %v287 = vmul.f32 %v281, %v286
    %v288 = vadd.f32 %v278, %v287
    %289 = vset.pattern.permute.xlu0 23
    %290 = vperm.xlu0 %289, %v37
    %v291 = vpop.permute.xlu0 %290
    %v293 = vlaneseq
    %v294 = vshrl.u32 %v293, 7
    %v295 = vsub.s32 7, %v294
    %v296 = vrot.slane %v214, %v295
    %v297 = vmul.f32 %v291, %v296
    %v298 = vadd.f32 %v288, %v297
    %v299 = vmul.f32 %v298, 0.5
    %v300 = vtanh.pop %v299
    %v301 = vadd.f32 %v300, 1.0
    %v302 = vmul.f32 %v301, 0.5
    %303 = vset.pattern.permute.xlu0 35
    %304 = vperm.xlu0 %303, %v37
    %v305 = vpop.permute.xlu0 %304
    %307 = vset.pattern.permute.xlu0 24
    %308 = vperm.xlu0 %307, %v37
    %v309 = vpop.permute.xlu0 %308
    %v311 = vlaneseq
    %v312 = vshrl.u32 %v311, 7
    %v313 = vsub.s32 0, %v312
    %v314 = vrot.slane %v302, %v313
    %v315 = vmul.f32 %v309, %v314
    %v316 = vadd.f32 %v305, %v315
    %317 = vset.pattern.permute.xlu0 25
    %318 = vperm.xlu0 %317, %v37
    %v319 = vpop.permute.xlu0 %318
    %v321 = vlaneseq
    %v322 = vshrl.u32 %v321, 7
    %v323 = vsub.s32 1, %v322
    %v324 = vrot.slane %v302, %v323
    %v325 = vmul.f32 %v319, %v324
    %v326 = vadd.f32 %v316, %v325
    %327 = vset.pattern.permute.xlu0 26
    %328 = vperm.xlu0 %327, %v37
    %v329 = vpop.permute.xlu0 %328
    %v331 = vlaneseq
    %v332 = vshrl.u32 %v331, 7
    %v333 = vsub.s32 2, %v332
    %v334 = vrot.slane %v302, %v333
    %v335 = vmul.f32 %v329, %v334
    %v336 = vadd.f32 %v326, %v335
    %337 = vset.pattern.permute.xlu0 27
    %338 = vperm.xlu0 %337, %v37
    %v339 = vpop.permute.xlu0 %338
    %v341 = vlaneseq
    %v342 = vshrl.u32 %v341, 7
    %v343 = vsub.s32 3, %v342
    %v344 = vrot.slane %v302, %v343
    %v345 = vmul.f32 %v339, %v344
    %v346 = vadd.f32 %v336, %v345
    %347 = vset.pattern.permute.xlu0 28
    %348 = vperm.xlu0 %347, %v37
    %v349 = vpop.permute.xlu0 %348
    %v351 = vlaneseq
    %v352 = vshrl.u32 %v351, 7
    %v353 = vsub.s32 4, %v352
    %v354 = vrot.slane %v302, %v353
    %v355 = vmul.f32 %v349, %v354
    %v356 = vadd.f32 %v346, %v355
    %357 = vset.pattern.permute.xlu0 29
    %358 = vperm.xlu0 %357, %v37
    %v359 = vpop.permute.xlu0 %358
    %v361 = vlaneseq
    %v362 = vshrl.u32 %v361, 7
    %v363 = vsub.s32 5, %v362
    %v364 = vrot.slane %v302, %v363
    %v365 = vmul.f32 %v359, %v364
    %v366 = vadd.f32 %v356, %v365
    %367 = vset.pattern.permute.xlu0 30
    %368 = vperm.xlu0 %367, %v37
    %v369 = vpop.permute.xlu0 %368
    %v371 = vlaneseq
    %v372 = vshrl.u32 %v371, 7
    %v373 = vsub.s32 6, %v372
    %v374 = vrot.slane %v302, %v373
    %v375 = vmul.f32 %v369, %v374
    %v376 = vadd.f32 %v366, %v375
    %377 = vset.pattern.permute.xlu0 31
    %378 = vperm.xlu0 %377, %v37
    %v379 = vpop.permute.xlu0 %378
    %v381 = vlaneseq
    %v382 = vshrl.u32 %v381, 7
    %v383 = vsub.s32 7, %v382
    %v384 = vrot.slane %v302, %v383
    %v385 = vmul.f32 %v379, %v384
    %v386 = vadd.f32 %v376, %v385
    %387 = vst [vmem:[#allocation7] sm:$0xff] %v386
    // Predicated region
    $region18: #{tpu_custom_call.1} parent=1 // pred_check
      _
    $region19: #{tpu_custom_call.1} parent=1 // pred_check_branch
      %389 = sbr.rel (0) target = $region21
    $region20: #{tpu_custom_call.1} parent=1 // pred_region
      %s391 = ssub.s32 128, 128
      %392 = vsyncadd [#allocation4], %s391
      %s394 = sshll.u32 [#allocation7], 4
      %s395 = int_to_ptr.vmem [resolvable:$true] %s394
      %397 = dma.vmem_to_hbm [thread:$0]  %s395, 128, %s2, [#allocation4]
    $region21: #{tpu_custom_call.1} parent=1 // pred_fallthru
      _
    // Predicated region
    $region22: #{tpu_custom_call.1} parent=1 // pred_check
      _
    $region23: #{tpu_custom_call.1} parent=1 // pred_check_branch
      %399 = sbr.rel (0) target = $region25
    $region24: #{tpu_custom_call.1} parent=1 // pred_region
      %400 = dma.done [#allocation4], 128
    $region25: #{tpu_custom_call.1} parent=1 // pred_fallthru
      _
    %401 = vsyncpa [#allocation3], 1
    %402 = vsyncpa [#allocation6], 1
    %403 = vsyncpa [#allocation4], 1

</llo_original>
